<compile_context>
chip_gen: v6e
topology: v6e:2x2x1
jax: 0.10.0
libtpu: 0.0.40
codegen_flags: <defaults>
</compile_context>

<pallas_src>
import jax
import jax.numpy as jnp
from jax.experimental import pallas as pl
from jax.experimental.pallas import tpu as pltpu

_LANES = 128     # vreg lane width (v5e / v6e / v7x)
_SUBLANES = 8    # vreg sublane count


def _add_module_kernel(x_ref, w_ref, b_ref, o_ref):
    # x_ref: (TN, D_in)      streamed over N (block index constant across Dout tiles)
    # w_ref: (D_in, TD)      fused weight column block (resident when one Dout tile)
    # b_ref: (1, TD)         fused bias, f32
    # o_ref: (TN, TD)        lane-dense output block
    x = x_ref[...].astype(w_ref.dtype)  # in-kernel cast (bf16 path); no-op for f32
    acc = jnp.dot(x, w_ref[...], preferred_element_type=jnp.float32)
    o_ref[...] = (acc + b_ref[...]).astype(o_ref.dtype)


def _round_up(a, m):
    return ((a + m - 1) // m) * m


def _vmem_limit_bytes():
    # Generation-aware scoped-VMEM budget: headroom on v7x (64 MiB per TC),
    # open up v5e/v6e (128 MiB).
    try:
        cap = pltpu.get_tpu_info().vmem_capacity_bytes
    except Exception:
        cap = 128 * 1024 * 1024
    if cap <= 64 * 1024 * 1024:
        return 40 * 1024 * 1024
    return 100 * 1024 * 1024


def _mxu_m():
    # MXU M-dimension granularity: 256 on v6e/v7x, 128 on older generations.
    try:
        kind = jax.devices()[0].device_kind.lower()
    except Exception:
        return 256
    return 128 if any(t in kind for t in ("v2", "v3", "v4", "v5")) else 256


def fuse_add_module_params(wf, bf, wg, bg, *, weight_dtype=None):
    """Algebraic fusion of f, g = nn.Linear(D_in, D_out):
    f(x)+g(x) = x @ (Wf+Wg)^T + (bf+bg).  D_out is padded to a lane multiple so
    output stores are full-lane vst.  Call once and cache (hoist off the hot
    path) when the module weights are static."""
    Dout, Din = wf.shape
    w = (wf + wg).T                                       # (D_in, D_out)
    b = (bf + bg).reshape(1, Dout).astype(jnp.float32)    # (1, D_out)
    Dout_p = _round_up(Dout, _LANES)
    if Dout_p != Dout:
        w = jnp.pad(w, ((0, 0), (0, Dout_p - Dout)))
        b = jnp.pad(b, ((0, 0), (0, Dout_p - Dout)))
    if weight_dtype is not None:
        w = w.astype(weight_dtype)                        # bias stays f32
    return w, b, Dout


def add_module_apply(x, w, b, dout, *, block_n=512, block_dout=512, out_dtype=None):
    """Run the fused kernel: out = x @ w + b, sliced back to (N, dout)."""
    N, Din = x.shape
    Din_w, Dout_p = w.shape
    assert Din_w == Din, "weight/input D_in mismatch"
    out_dtype = x.dtype if out_dtype is None else out_dtype

    vmem_limit = _vmem_limit_bytes()
    mxu_m = _mxu_m()

    # N tile: MXU-M granular for large N, sublane granular for tiny N.
    n8 = max(_SUBLANES, _round_up(N, _SUBLANES))
    if n8 <= mxu_m:
        tn = n8
    else:
        tn = max(mxu_m, (min(block_n, _round_up(n8, mxu_m)) // mxu_m) * mxu_m)

    # Dout tile: stream weight column blocks when Dout_p is large.
    td = Dout_p if Dout_p <= block_dout else _round_up(block_dout, _LANES)

    # Shrink tiles until the per-step VMEM estimate fits the scoped limit.
    x_bpe = x.dtype.itemsize
    w_bpe = w.dtype.itemsize
    o_bpe = jnp.dtype(out_dtype).itemsize

    def vmem_est(tn_, td_, w_bufs):
        return (2 * tn_ * Din * x_bpe          # x, double-buffered
                + w_bufs * Din * td_ * w_bpe   # weight block(s)
                + 2 * td_ * 4                  # bias
                + 2 * tn_ * td_ * o_bpe)       # out, double-buffered

    budget = int(0.8 * vmem_limit)
    while vmem_est(tn, td, 2) > budget and tn > _SUBLANES:
        tn = max(_SUBLANES, _round_up(tn // 2, _SUBLANES))
    while vmem_est(tn, td, 2) > budget and td > _LANES:
        td = max(_LANES, _round_up(td // 2, _LANES))
    # TODO(synk): add a K (D_in) grid axis ("arbitrary", last) with an f32 VMEM
    # accumulator + pl.when init/finalize for D_in too large to fit a
    # (D_in, 128) weight column block in VMEM.

    n_n_tiles = pl.cdiv(N, tn)
    n_d_tiles = pl.cdiv(Dout_p, td)
    grid = (n_n_tiles, n_d_tiles)

    cost = pl.CostEstimate(
        flops=2 * N * Din * Dout_p,
        transcendentals=0,
        bytes_accessed=(N * Din * x_bpe + Din * Dout_p * w_bpe
                        + Dout_p * 4 + N * Dout_p * o_bpe),
    )

    def build(single_buffer_resident):
        res_kwargs = (dict(pipeline_mode=pl.Buffered(1))
                      if single_buffer_resident else {})
        return pl.pallas_call(
            _add_module_kernel,
            out_shape=jax.ShapeDtypeStruct((N, Dout_p), out_dtype),
            grid_spec=pltpu.PrefetchScalarGridSpec(
                num_scalar_prefetch=0,
                grid=grid,
                in_specs=[
                    # x streams over N; its block index is constant across the
                    # inner Dout axis, so Pallas skips the re-fetch.
                    pl.BlockSpec((tn, Din), lambda i, j: (i, 0)),
                    pl.BlockSpec((Din, td), lambda i, j: (0, j), **res_kwargs),
                    pl.BlockSpec((1, td), lambda i, j: (0, j), **res_kwargs),
                ],
                out_specs=pl.BlockSpec((tn, td), lambda i, j: (i, j)),
            ),
            compiler_params=pltpu.CompilerParams(
                dimension_semantics=("parallel", "parallel"),
                vmem_limit_bytes=vmem_limit,
            ),
            cost_estimate=cost,
        )

    try:
        # Single-buffer the weight/bias when they are truly resident (never
        # re-fetched) -- halves their VMEM footprint.
        out = build(single_buffer_resident=(n_d_tiles == 1))(x, w, b)
    except Exception:
        # Robust fallback: default double-buffered configuration.
        out = build(single_buffer_resident=False)(x, w, b)

    return out[:, :dout]


def add_module_forward(x, wf, bf, wg, bg, *, use_bf16_mxu=False, block_n=512,
                       out_dtype=None):
    """Fused f(x) + g(x) for f, g = nn.Linear(D_in, D_out).

    x:       (N, D_in)     float32
    wf, wg:  (D_out, D_in) float32  (PyTorch nn.Linear weight layout)
    bf, bg:  (D_out,)      float32
    """
    weight_dtype = jnp.bfloat16 if use_bf16_mxu else None
    w, b, dout = fuse_add_module_params(wf, bf, wg, bg, weight_dtype=weight_dtype)
    return add_module_apply(x, w, b, dout, block_n=block_n, out_dtype=out_dtype)


def _reference(x, wf, bf, wg, bg):
    return (x @ wf.T + bf) + (x @ wg.T + bg)


if __name__ == "__main__":
    key = jax.random.PRNGKey(0)
    kx, kwf, kbf, kwg, kbg = jax.random.split(key, 5)

    # Small shapes consistent with an MLP_resnet AddModule of two Linears:
    # batch=8, hidden=32.
    N, Din, Dout = 8, 32, 32
    x = jax.random.normal(kx, (N, Din), dtype=jnp.float32)
    wf = jax.random.normal(kwf, (Dout, Din), dtype=jnp.float32) * 0.1
    bf = jax.random.normal(kbf, (Dout,), dtype=jnp.float32) * 0.1
    wg = jax.random.normal(kwg, (Dout, Din), dtype=jnp.float32) * 0.1
    bg = jax.random.normal(kbg, (Dout,), dtype=jnp.float32) * 0.1

    ref = _reference(x, wf, bf, wg, bg)

    # f32 path (algebraic fusion differs from separate f(x)+g(x) only by rounding).
    out = jax.block_until_ready(add_module_forward(x, wf, bf, wg, bg))
    assert out.shape == (N, Dout)
    assert jnp.allclose(out, ref, atol=1e-4, rtol=1e-4), "f32 mismatch vs reference"

    # bf16-MXU path: weight cast in glue, x cast in-kernel, f32 accumulation.
    # Tolerance gated looser -- bf16 inputs change results at ~1e-2 level.
    out_bf16 = jax.block_until_ready(
        add_module_forward(x, wf, bf, wg, bg, use_bf16_mxu=True))
    assert jnp.allclose(out_bf16, ref, atol=5e-2, rtol=5e-2), "bf16 mismatch vs reference"

    # Ragged-N / padded-Dout path (no wrapper-side N padding, masked last block).
    N2, Din2, Dout2 = 300, 192, 384
    k2 = jax.random.split(jax.random.PRNGKey(1), 5)
    x2 = jax.random.normal(k2[0], (N2, Din2), dtype=jnp.float32)
    wf2 = jax.random.normal(k2[1], (Dout2, Din2), dtype=jnp.float32) * 0.05
    bf2 = jax.random.normal(k2[2], (Dout2,), dtype=jnp.float32) * 0.05
    wg2 = jax.random.normal(k2[3], (Dout2, Din2), dtype=jnp.float32) * 0.05
    bg2 = jax.random.normal(k2[4], (Dout2,), dtype=jnp.float32) * 0.05
    out2 = jax.block_until_ready(add_module_forward(x2, wf2, bf2, wg2, bg2))
    ref2 = _reference(x2, wf2, bf2, wg2, bg2)
    assert out2.shape == (N2, Dout2)
    assert jnp.allclose(out2, ref2, atol=5e-3, rtol=5e-3), "ragged-N mismatch vs reference"

    print("KERNEL_OK")
</pallas_src>

<mosaic_0001>
module attributes {stable_mosaic.version = 11 : i64} {
  func.func @_add_module_kernel(%arg0: i32, %arg1: i32, %arg2: memref<8x32xf32, #tpu.memory_space<vmem>>, %arg3: memref<32x128xf32, #tpu.memory_space<vmem>>, %arg4: memref<1x128xf32, #tpu.memory_space<vmem>>, %arg5: memref<8x128xf32, #tpu.memory_space<vmem>>) attributes {dimension_semantics = [#tpu.dimension_semantics<parallel>, #tpu.dimension_semantics<parallel>], iteration_bounds = array<i64: 1, 1>, scalar_prefetch = 0 : i64, scratch_operands = 0 : i64, tpu.core_type = #tpu.core_type<tc>, window_params = [{transform_indices = @transform_0, window_bounds = array<i64: 8, 32>}, {pipeline_mode = #tpu.pipeline_mode<synchronous>, transform_indices = @transform_1, window_bounds = array<i64: 32, 128>}, {pipeline_mode = #tpu.pipeline_mode<synchronous>, transform_indices = @transform_2, window_bounds = array<i64: 1, 128>}, {transform_indices = @transform_3, window_bounds = array<i64: 8, 128>}]} {
    %c0 = arith.constant 0 : index
    %c0_0 = arith.constant 0 : index
    %0 = vector.load %arg2[%c0, %c0_0] : memref<8x32xf32, #tpu.memory_space<vmem>>, vector<8x32xf32>
    %c0_1 = arith.constant 0 : index
    %c0_2 = arith.constant 0 : index
    %1 = vector.load %arg3[%c0_1, %c0_2] : memref<32x128xf32, #tpu.memory_space<vmem>>, vector<32x128xf32>
    %cst = arith.constant dense<0.000000e+00> : vector<8x128xf32>
    %2 = tpu.matmul %0, %1, %cst {dimension_numbers = #tpu.dot_dimension_numbers<[1], [0], [0], [1], [0, 0, 1, 1], [], []>} : vector<8x32xf32>, vector<32x128xf32>, vector<8x128xf32> -> vector<8x128xf32>
    %c0_3 = arith.constant 0 : index
    %c0_4 = arith.constant 0 : index
    %3 = vector.load %arg4[%c0_3, %c0_4] : memref<1x128xf32, #tpu.memory_space<vmem>>, vector<1x128xf32>
    %4 = vector.broadcast %3 : vector<1x128xf32> to vector<8x128xf32>
    %5 = arith.addf %2, %4 : vector<8x128xf32>
    %c0_5 = arith.constant 0 : index
    %c0_6 = arith.constant 0 : index
    %6 = vector.load %arg5[%c0_5, %c0_6] : memref<8x128xf32, #tpu.memory_space<vmem>>, vector<8x128xf32>
    tpu.vector_store %arg5[%c0_5, %c0_6], %5 {strides = array<i32>} : memref<8x128xf32, #tpu.memory_space<vmem>>, vector<8x128xf32>,
    return
  }
  func.func @transform_0(%arg0: i32, %arg1: i32) -> (i32, i32) {
    %c0_i32 = arith.constant 0 : i32
    %c0_i32_0 = arith.constant 0 : i32
    return %arg0, %c0_i32 : i32, i32
  }
  func.func @transform_1(%arg0: i32, %arg1: i32) -> (i32, i32) {
    %c0_i32 = arith.constant 0 : i32
    %c0_i32_0 = arith.constant 0 : i32
    return %c0_i32, %arg1 : i32, i32
  }
  func.func @transform_2(%arg0: i32, %arg1: i32) -> (i32, i32) {
    %c0_i32 = arith.constant 0 : i32
    %c0_i32_0 = arith.constant 0 : i32
    return %c0_i32, %arg1 : i32, i32
  }
  func.func @transform_3(%arg0: i32, %arg1: i32) -> (i32, i32) {
    %c0_i32 = arith.constant 0 : i32
    return %arg0, %arg1 : i32, i32
  }
}

module attributes {stable_mosaic.version = 11 : i64} {
  func.func @_add_module_kernel(%arg0: i32, %arg1: i32, %arg2: memref<8x32xf32, #tpu.memory_space<vmem>>, %arg3: memref<32x128xf32, #tpu.memory_space<vmem>>, %arg4: memref<1x128xf32, #tpu.memory_space<vmem>>, %arg5: memref<8x128xf32, #tpu.memory_space<vmem>>) attributes {dimension_semantics = [#tpu.dimension_semantics<parallel>, #tpu.dimension_semantics<parallel>], iteration_bounds = array<i64: 1, 1>, scalar_prefetch = 0 : i64, scratch_operands = 0 : i64, tpu.core_type = #tpu.core_type<tc>, window_params = [{transform_indices = @transform_0, window_bounds = array<i64: 8, 32>}, {transform_indices = @transform_1, window_bounds = array<i64: 32, 128>}, {transform_indices = @transform_2, window_bounds = array<i64: 1, 128>}, {transform_indices = @transform_3, window_bounds = array<i64: 8, 128>}]} {
    %c0 = arith.constant 0 : index
    %c0_0 = arith.constant 0 : index
    %0 = vector.load %arg2[%c0, %c0_0] : memref<8x32xf32, #tpu.memory_space<vmem>>, vector<8x32xf32>
    %c0_1 = arith.constant 0 : index
    %c0_2 = arith.constant 0 : index
    %1 = vector.load %arg3[%c0_1, %c0_2] : memref<32x128xf32, #tpu.memory_space<vmem>>, vector<32x128xf32>
    %cst = arith.constant dense<0.000000e+00> : vector<8x128xf32>
    %2 = tpu.matmul %0, %1, %cst {dimension_numbers = #tpu.dot_dimension_numbers<[1], [0], [0], [1], [0, 0, 1, 1], [], []>} : vector<8x32xf32>, vector<32x128xf32>, vector<8x128xf32> -> vector<8x128xf32>
    %c0_3 = arith.constant 0 : index
    %c0_4 = arith.constant 0 : index
    %3 = vector.load %arg4[%c0_3, %c0_4] : memref<1x128xf32, #tpu.memory_space<vmem>>, vector<1x128xf32>
    %4 = vector.broadcast %3 : vector<1x128xf32> to vector<8x128xf32>
    %5 = arith.addf %2, %4 : vector<8x128xf32>
    %c0_5 = arith.constant 0 : index
    %c0_6 = arith.constant 0 : index
    %6 = vector.load %arg5[%c0_5, %c0_6] : memref<8x128xf32, #tpu.memory_space<vmem>>, vector<8x128xf32>
    tpu.vector_store %arg5[%c0_5, %c0_6], %5 {strides = array<i32>} : memref<8x128xf32, #tpu.memory_space<vmem>>, vector<8x128xf32>,
    return
  }
  func.func @transform_0(%arg0: i32, %arg1: i32) -> (i32, i32) {
    %c0_i32 = arith.constant 0 : i32
    %c0_i32_0 = arith.constant 0 : i32
    return %arg0, %c0_i32 : i32, i32
  }
  func.func @transform_1(%arg0: i32, %arg1: i32) -> (i32, i32) {
    %c0_i32 = arith.constant 0 : i32
    %c0_i32_0 = arith.constant 0 : i32
    return %c0_i32, %arg1 : i32, i32
  }
  func.func @transform_2(%arg0: i32, %arg1: i32) -> (i32, i32) {
    %c0_i32 = arith.constant 0 : i32
    %c0_i32_0 = arith.constant 0 : i32
    return %c0_i32, %arg1 : i32, i32
  }
  func.func @transform_3(%arg0: i32, %arg1: i32) -> (i32, i32) {
    %c0_i32 = arith.constant 0 : i32
    return %arg0, %arg1 : i32, i32
  }
}

</mosaic_0001>

<llo_original>
// kernel: tpu_custom_call.1
$region0: #{tpu_custom_call.1}
  #allocation0 [shape = 'u32[]', space=smem, size = 0x4, offset = 0x4, fixed_abs, tag = 'smem constant byte address 0x4 - core index']
  #allocation1 [shape = 'u32[144,128]{1,0:T(1,128)}', space=vmem, size = 0x12000, scoped, tag = 'internal scratch']
  %s0 = inlined_call_operand.hbm [shape: f32[8,32], index: 0, kind: input, shape index: {}]
  %s1 = inlined_call_operand.hbm [shape: f32[32,128], index: 1, kind: input, shape index: {}]
  %s2 = inlined_call_operand.vmem [shape: f32[1,128], index: 2, kind: input, shape index: {}]
  %s3 = inlined_call_operand.hbm [shape: f32[8,128], index: 3, kind: output, shape index: {}]
  %s4 = sld [smem:[#allocation0]]
  $region30: #{tpu_custom_call.1} parent=0
    _
  %s6 = ssub.s32 1, %s4
  %s7 = scalar_select 0, %s6, %s4
  $region1: #{tpu_custom_call.1} parent=0
    #allocation2 [shape = 'u8[4096]{0}', space=vmem, size = 0x1000, scoped, tag = 'input window, operand 0, single buffered']
    #allocation3 [shape = 's32[1]{0}', space=sflag, size = 0x4, scoped, tag = 'scoped memory for tpu_custom_call.1']
    #allocation4 [shape = 's32[1]{0}', space=sflag, size = 0x4, scoped, tag = 'scoped memory for tpu_custom_call.1']
    #allocation5 [shape = 'u8[16384]{0}', space=vmem, size = 0x4000, scoped, tag = 'input window, operand 1, single buffered']
    #allocation6 [shape = 's32[1]{0}', space=sflag, size = 0x4, scoped, tag = 'scoped memory for tpu_custom_call.1']
    #allocation7 [shape = 'u8[4096]{0}', space=vmem, size = 0x1000, scoped, tag = 'output window, operand 0, single buffered']
    %8 = vsyncpa [#allocation3], 0
    %9 = vsyncpa [#allocation6], 0
    %10 = vsyncpa [#allocation4], 0
    // Predicated region
    $region2: #{tpu_custom_call.1} parent=1 // pred_check
      _
    $region3: #{tpu_custom_call.1} parent=1 // pred_check_branch
      %12 = sbr.rel (0) target = $region5
    $region4: #{tpu_custom_call.1} parent=1 // pred_region
      %s14 = ssub.s32 128, 128
      %15 = vsyncadd [#allocation3], %s14
      %s17 = sshll.u32 [#allocation2], 4
      %s18 = int_to_ptr.vmem [resolvable:$true] %s17
      %20 = dma.hbm_to_vmem [thread:$0]  %s0, 128, %s18, [#allocation3]
    $region5: #{tpu_custom_call.1} parent=1 // pred_fallthru
      _
    // Predicated region
    $region6: #{tpu_custom_call.1} parent=1 // pred_check
      _
    $region7: #{tpu_custom_call.1} parent=1 // pred_check_branch
      %22 = sbr.rel (0) target = $region9
    $region8: #{tpu_custom_call.1} parent=1 // pred_region
      %s24 = ssub.s32 512, 512
      %25 = vsyncadd [#allocation6], %s24
      %s26 = sshll.u32 [#allocation5], 4
      %s27 = int_to_ptr.vmem [resolvable:$true] %s26
      %32 = dma.hbm_to_vmem [thread:$0]  %s1, 512, %s27, [#allocation6], 128, 128, 8
    $region9: #{tpu_custom_call.1} parent=1 // pred_fallthru
      _
    // Predicated region
    $region10: #{tpu_custom_call.1} parent=1 // pred_check
      _
    $region11: #{tpu_custom_call.1} parent=1 // pred_check_branch
      %34 = sbr.rel (0) target = $region13
    $region12: #{tpu_custom_call.1} parent=1 // pred_region
      _
    $region13: #{tpu_custom_call.1} parent=1 // pred_fallthru
      _
    // Predicated region
    $region14: #{tpu_custom_call.1} parent=1 // pred_check
      _
    $region15: #{tpu_custom_call.1} parent=1 // pred_check_branch
      %36 = sbr.rel (0) target = $region17
    $region16: #{tpu_custom_call.1} parent=1 // pred_region
      %37 = dma.done [#allocation3], 128
    $region17: #{tpu_custom_call.1} parent=1 // pred_fallthru
      _
    // Predicated region
    $region18: #{tpu_custom_call.1} parent=1 // pred_check
      _
    $region19: #{tpu_custom_call.1} parent=1 // pred_check_branch
      %39 = sbr.rel (0) target = $region21
    $region20: #{tpu_custom_call.1} parent=1 // pred_region
      %40 = dma.done [#allocation6], 512
    $region21: #{tpu_custom_call.1} parent=1 // pred_fallthru
      _
    %v41 = vld [vmem:[#allocation2] sm:$0xff]
    %v42 = vld [vmem:[#allocation5] sm:$0xff]
    %v43 = vld [vmem:[#allocation5 + $0x8] sm:$0xff]
    %v44 = vld [vmem:[#allocation5 + $0x10] sm:$0xff]
    %v45 = vld [vmem:[#allocation5 + $0x18] sm:$0xff]
    %v46 = vld [vmem:[%s2] sm:$0x1]
    %v48 = vlaneseq
    %v49 = vshrl.u32 %v48, 7
    %v50 = vsub.s32 0, %v49
    %v51 = vrot.slane %v46, %v50
    %vm53 = vcmask 261120
    %v55 = vsel %vm53, %v41, 0
    %57 = vmatprep.subr.mxu0 0.0
    %58 = vmatpush1.msra.mxu0 0.0
    %59 = vmatprep.subr.mxu0 0.0
    %60 = vmatpush1.msra.mxu0 0.0
    %61 = vmatprep.subr.mxu0 0.0
    %62 = vmatpush1.msra.mxu0 0.0
    %63 = vmatprep.subr.mxu0 0.0
    %64 = vmatpush1.msra.mxu0 0.0
    %65 = vmatprep.subr.mxu0 0.0
    %66 = vmatpush1.msra.mxu0 0.0
    %67 = vmatprep.subr.mxu0 0.0
    %68 = vmatpush1.msra.mxu0 0.0
    %69 = vmatprep.subr.mxu0 0.0
    %70 = vmatpush1.msra.mxu0 0.0
    %71 = vmatprep.subr.mxu0 0.0
    %72 = vmatpush1.msra.mxu0 0.0
    %73 = vmatprep.subr.mxu0 0.0
    %74 = vmatpush1.msra.mxu0 0.0
    %75 = vmatprep.subr.mxu0 0.0
    %76 = vmatpush1.msra.mxu0 0.0
    %77 = vmatprep.subr.mxu0 0.0
    %78 = vmatpush1.msra.mxu0 0.0
    %79 = vmatprep.subr.mxu0 0.0
    %80 = vmatpush1.msra.mxu0 0.0
    %81 = vmatprep.subr.mxu0 0.0
    %82 = vmatpush1.msra.mxu0 %v45
    %83 = vmatprep.subr.mxu0 0.0
    %84 = vmatpush1.msra.mxu0 %v44
    %85 = vmatprep.subr.mxu0 0.0
    %86 = vmatpush1.msra.mxu0 %v43
    %87 = vmatprep.subr.mxu0 0.0
    %88 = vmatpush1.msra.mxu0 %v42
    %89 = vmatprep.subr.mxu0 0.0
    %90 = vmatpush2.msra.mxu0 0.0
    %91 = vmatprep.subr.mxu0 0.0
    %92 = vmatpush2.msra.mxu0 0.0
    %93 = vmatprep.subr.mxu0 0.0
    %94 = vmatpush2.msra.mxu0 0.0
    %95 = vmatprep.subr.mxu0 0.0
    %96 = vmatpush2.msra.mxu0 0.0
    %97 = vmatprep.subr.mxu0 0.0
    %98 = vmatpush2.msra.mxu0 0.0
    %99 = vmatprep.subr.mxu0 0.0
    %100 = vmatpush2.msra.mxu0 0.0
    %101 = vmatprep.subr.mxu0 0.0
    %102 = vmatpush2.msra.mxu0 0.0
    %103 = vmatprep.subr.mxu0 0.0
    %104 = vmatpush2.msra.mxu0 0.0
    %105 = vmatprep.subr.mxu0 0.0
    %106 = vmatpush2.msra.mxu0 0.0
    %107 = vmatprep.subr.mxu0 0.0
    %108 = vmatpush2.msra.mxu0 0.0
    %109 = vmatprep.subr.mxu0 0.0
    %110 = vmatpush2.msra.mxu0 0.0
    %111 = vmatprep.subr.mxu0 0.0
    %112 = vmatpush2.msra.mxu0 0.0
    %113 = vmatprep.subr.mxu0 0.0
    %114 = vmatpush2.msra.mxu0 0.0
    %115 = vmatprep.subr.mxu0 0.0
    %116 = vmatpush2.msra.mxu0 0.0
    %117 = vmatprep.subr.mxu0 0.0
    %118 = vmatpush2.msra.mxu0 0.0
    %119 = vmatprep.subr.mxu0 0.0
    %120 = vmatpush2.msra.mxu0 0.0
    %121 = vmatprep.mubr.f32.mxu0 0.0
    %122 = vmatmul.mubr.f32.gmra.mxu0 %v55
    %v123 = vpop.f32.mrf.mxu0
    %v124 = vadd.f32 %v51, %v123
    %v125 = vpop.f32.mrf.mxu0
    %126 = vdwg.mxu0
    %127 = vst [vmem:[#allocation7] sm:$0xff] %v124
    // Predicated region
    $region22: #{tpu_custom_call.1} parent=1 // pred_check
      _
    $region23: #{tpu_custom_call.1} parent=1 // pred_check_branch
      %129 = sbr.rel (0) target = $region25
    $region24: #{tpu_custom_call.1} parent=1 // pred_region
      %s131 = ssub.s32 128, 128
      %132 = vsyncadd [#allocation4], %s131
      %s134 = sshll.u32 [#allocation7], 4
      %s135 = int_to_ptr.vmem [resolvable:$true] %s134
      %137 = dma.vmem_to_hbm [thread:$0]  %s135, 128, %s3, [#allocation4]
    $region25: #{tpu_custom_call.1} parent=1 // pred_fallthru
      _
    // Predicated region
    $region26: #{tpu_custom_call.1} parent=1 // pred_check
      _
    $region27: #{tpu_custom_call.1} parent=1 // pred_check_branch
      %139 = sbr.rel (0) target = $region29
    $region28: #{tpu_custom_call.1} parent=1 // pred_region
      %140 = dma.done [#allocation4], 128
    $region29: #{tpu_custom_call.1} parent=1 // pred_fallthru
      _
    %141 = vsyncpa [#allocation3], 1
    %142 = vsyncpa [#allocation6], 1
    %143 = vsyncpa [#allocation4], 1

// kernel: tpu_custom_call.1
$region0: #{tpu_custom_call.1}
  #allocation0 [shape = 'u32[]', space=smem, size = 0x4, offset = 0x4, fixed_abs, tag = 'smem constant byte address 0x4 - core index']
  #allocation1 [shape = 'u32[144,128]{1,0:T(1,128)}', space=vmem, size = 0x12000, scoped, tag = 'internal scratch']
  %s0 = inlined_call_operand.hbm [shape: f32[8,32], index: 0, kind: input, shape index: {}]
  %s1 = inlined_call_operand.hbm [shape: f32[32,128], index: 1, kind: input, shape index: {}]
  %s2 = inlined_call_operand.vmem [shape: f32[1,128], index: 2, kind: input, shape index: {}]
  %s3 = inlined_call_operand.hbm [shape: f32[8,128], index: 3, kind: output, shape index: {}]
  %s4 = sld [smem:[#allocation0]]
  $region30: #{tpu_custom_call.1} parent=0
    _
  %s6 = ssub.s32 1, %s4
  %s7 = scalar_select 0, %s6, %s4
  $region1: #{tpu_custom_call.1} parent=0
    #allocation2 [shape = 'u8[4096]{0}', space=vmem, size = 0x1000, scoped, tag = 'input window, operand 0, single buffered']
    #allocation3 [shape = 's32[1]{0}', space=sflag, size = 0x4, scoped, tag = 'scoped memory for tpu_custom_call.1']
    #allocation4 [shape = 's32[1]{0}', space=sflag, size = 0x4, scoped, tag = 'scoped memory for tpu_custom_call.1']
    #allocation5 [shape = 'u8[16384]{0}', space=vmem, size = 0x4000, scoped, tag = 'input window, operand 1, single buffered']
    #allocation6 [shape = 's32[1]{0}', space=sflag, size = 0x4, scoped, tag = 'scoped memory for tpu_custom_call.1']
    #allocation7 [shape = 'u8[4096]{0}', space=vmem, size = 0x1000, scoped, tag = 'output window, operand 0, single buffered']
    %8 = vsyncpa [#allocation3], 0
    %9 = vsyncpa [#allocation6], 0
    %10 = vsyncpa [#allocation4], 0
    // Predicated region
    $region2: #{tpu_custom_call.1} parent=1 // pred_check
      _
    $region3: #{tpu_custom_call.1} parent=1 // pred_check_branch
      %12 = sbr.rel (0) target = $region5
    $region4: #{tpu_custom_call.1} parent=1 // pred_region
      %s14 = ssub.s32 128, 128
      %15 = vsyncadd [#allocation3], %s14
      %s17 = sshll.u32 [#allocation2], 4
      %s18 = int_to_ptr.vmem [resolvable:$true] %s17
      %20 = dma.hbm_to_vmem [thread:$0]  %s0, 128, %s18, [#allocation3]
    $region5: #{tpu_custom_call.1} parent=1 // pred_fallthru
      _
    // Predicated region
    $region6: #{tpu_custom_call.1} parent=1 // pred_check
      _
    $region7: #{tpu_custom_call.1} parent=1 // pred_check_branch
      %22 = sbr.rel (0) target = $region9
    $region8: #{tpu_custom_call.1} parent=1 // pred_region
      %s24 = ssub.s32 512, 512
      %25 = vsyncadd [#allocation6], %s24
      %s26 = sshll.u32 [#allocation5], 4
      %s27 = int_to_ptr.vmem [resolvable:$true] %s26
      %32 = dma.hbm_to_vmem [thread:$0]  %s1, 512, %s27, [#allocation6], 128, 128, 8
    $region9: #{tpu_custom_call.1} parent=1 // pred_fallthru
      _
    // Predicated region
    $region10: #{tpu_custom_call.1} parent=1 // pred_check
      _
    $region11: #{tpu_custom_call.1} parent=1 // pred_check_branch
      %34 = sbr.rel (0) target = $region13
    $region12: #{tpu_custom_call.1} parent=1 // pred_region
      _
    $region13: #{tpu_custom_call.1} parent=1 // pred_fallthru
      _
    // Predicated region
    $region14: #{tpu_custom_call.1} parent=1 // pred_check
      _
    $region15: #{tpu_custom_call.1} parent=1 // pred_check_branch
      %36 = sbr.rel (0) target = $region17
    $region16: #{tpu_custom_call.1} parent=1 // pred_region
      %37 = dma.done [#allocation3], 128
    $region17: #{tpu_custom_call.1} parent=1 // pred_fallthru
      _
    // Predicated region
    $region18: #{tpu_custom_call.1} parent=1 // pred_check
      _
    $region19: #{tpu_custom_call.1} parent=1 // pred_check_branch
      %39 = sbr.rel (0) target = $region21
    $region20: #{tpu_custom_call.1} parent=1 // pred_region
      %40 = dma.done [#allocation6], 512
    $region21: #{tpu_custom_call.1} parent=1 // pred_fallthru
      _
    %v41 = vld [vmem:[#allocation2] sm:$0xff]
    %v42 = vld [vmem:[#allocation5] sm:$0xff]
    %v43 = vld [vmem:[#allocation5 + $0x8] sm:$0xff]
    %v44 = vld [vmem:[#allocation5 + $0x10] sm:$0xff]
    %v45 = vld [vmem:[#allocation5 + $0x18] sm:$0xff]
    %v46 = vld [vmem:[%s2] sm:$0x1]
    %v48 = vlaneseq
    %v49 = vshrl.u32 %v48, 7
    %v50 = vsub.s32 0, %v49
    %v51 = vrot.slane %v46, %v50
    %vm53 = vcmask 261120
    %v55 = vsel %vm53, %v41, 0
    %57 = vmatprep.subr.mxu0 0.0
    %58 = vmatpush1.msra.mxu0 0.0
    %59 = vmatprep.subr.mxu0 0.0
    %60 = vmatpush1.msra.mxu0 0.0
    %61 = vmatprep.subr.mxu0 0.0
    %62 = vmatpush1.msra.mxu0 0.0
    %63 = vmatprep.subr.mxu0 0.0
    %64 = vmatpush1.msra.mxu0 0.0
    %65 = vmatprep.subr.mxu0 0.0
    %66 = vmatpush1.msra.mxu0 0.0
    %67 = vmatprep.subr.mxu0 0.0
    %68 = vmatpush1.msra.mxu0 0.0
    %69 = vmatprep.subr.mxu0 0.0
    %70 = vmatpush1.msra.mxu0 0.0
    %71 = vmatprep.subr.mxu0 0.0
    %72 = vmatpush1.msra.mxu0 0.0
    %73 = vmatprep.subr.mxu0 0.0
    %74 = vmatpush1.msra.mxu0 0.0
    %75 = vmatprep.subr.mxu0 0.0
    %76 = vmatpush1.msra.mxu0 0.0
    %77 = vmatprep.subr.mxu0 0.0
    %78 = vmatpush1.msra.mxu0 0.0
    %79 = vmatprep.subr.mxu0 0.0
    %80 = vmatpush1.msra.mxu0 0.0
    %81 = vmatprep.subr.mxu0 0.0
    %82 = vmatpush1.msra.mxu0 %v45
    %83 = vmatprep.subr.mxu0 0.0
    %84 = vmatpush1.msra.mxu0 %v44
    %85 = vmatprep.subr.mxu0 0.0
    %86 = vmatpush1.msra.mxu0 %v43
    %87 = vmatprep.subr.mxu0 0.0
    %88 = vmatpush1.msra.mxu0 %v42
    %89 = vmatprep.subr.mxu0 0.0
    %90 = vmatpush2.msra.mxu0 0.0
    %91 = vmatprep.subr.mxu0 0.0
    %92 = vmatpush2.msra.mxu0 0.0
    %93 = vmatprep.subr.mxu0 0.0
    %94 = vmatpush2.msra.mxu0 0.0
    %95 = vmatprep.subr.mxu0 0.0
    %96 = vmatpush2.msra.mxu0 0.0
    %97 = vmatprep.subr.mxu0 0.0
    %98 = vmatpush2.msra.mxu0 0.0
    %99 = vmatprep.subr.mxu0 0.0
    %100 = vmatpush2.msra.mxu0 0.0
    %101 = vmatprep.subr.mxu0 0.0
    %102 = vmatpush2.msra.mxu0 0.0
    %103 = vmatprep.subr.mxu0 0.0
    %104 = vmatpush2.msra.mxu0 0.0
    %105 = vmatprep.subr.mxu0 0.0
    %106 = vmatpush2.msra.mxu0 0.0
    %107 = vmatprep.subr.mxu0 0.0
    %108 = vmatpush2.msra.mxu0 0.0
    %109 = vmatprep.subr.mxu0 0.0
    %110 = vmatpush2.msra.mxu0 0.0
    %111 = vmatprep.subr.mxu0 0.0
    %112 = vmatpush2.msra.mxu0 0.0
    %113 = vmatprep.subr.mxu0 0.0
    %114 = vmatpush2.msra.mxu0 0.0
    %115 = vmatprep.subr.mxu0 0.0
    %116 = vmatpush2.msra.mxu0 0.0
    %117 = vmatprep.subr.mxu0 0.0
    %118 = vmatpush2.msra.mxu0 0.0
    %119 = vmatprep.subr.mxu0 0.0
    %120 = vmatpush2.msra.mxu0 0.0
    %121 = vmatprep.mubr.f32.mxu0 0.0
    %122 = vmatmul.mubr.f32.gmra.mxu0 %v55
    %v123 = vpop.f32.mrf.mxu0
    %v124 = vadd.f32 %v51, %v123
    %v125 = vpop.f32.mrf.mxu0
    %126 = vdwg.mxu0
    %127 = vst [vmem:[#allocation7] sm:$0xff] %v124
    // Predicated region
    $region22: #{tpu_custom_call.1} parent=1 // pred_check
      _
    $region23: #{tpu_custom_call.1} parent=1 // pred_check_branch
      %129 = sbr.rel (0) target = $region25
    $region24: #{tpu_custom_call.1} parent=1 // pred_region
      %s131 = ssub.s32 128, 128
      %132 = vsyncadd [#allocation4], %s131
      %s134 = sshll.u32 [#allocation7], 4
      %s135 = int_to_ptr.vmem [resolvable:$true] %s134
      %137 = dma.vmem_to_hbm [thread:$0]  %s135, 128, %s3, [#allocation4]
    $region25: #{tpu_custom_call.1} parent=1 // pred_fallthru
      _
    // Predicated region
    $region26: #{tpu_custom_call.1} parent=1 // pred_check
      _
    $region27: #{tpu_custom_call.1} parent=1 // pred_check_branch
      %139 = sbr.rel (0) target = $region29
    $region28: #{tpu_custom_call.1} parent=1 // pred_region
      %140 = dma.done [#allocation4], 128
    $region29: #{tpu_custom_call.1} parent=1 // pred_fallthru
      _
    %141 = vsyncpa [#allocation3], 1
    %142 = vsyncpa [#allocation6], 1
    %143 = vsyncpa [#allocation4], 1

</llo_original>
